<compile_context>
chip_gen: v5e
topology: v5e:2x2
jax: 0.10.0
libtpu: 0.0.40
codegen_flags: <defaults>
</compile_context>

<pallas_src>
import jax
import jax.numpy as jnp
from jax import lax
from jax.experimental import pallas as pl
from jax.experimental.pallas import tpu as pltpu

LANE = 128   # TPU vreg lane width
SUBLANE = 8  # TPU vreg sublane width


def _round_up(n, m):
    return (n + m - 1) // m * m


# --------------------------------------------------------------------------- #
# Kernel
# --------------------------------------------------------------------------- #
def mlp_kernel(x_ref, w1_ref, b1_ref, w2_ref, b2_ref, w3_ref, b3_ref, o_ref):
    cdtype = w1_ref.dtype  # bf16 compute dtype for MXU inputs

    # Hidden layer 1: Linear (bf16 in, f32 accumulate) + bias + ReLU in f32.
    # Dropout(p=0) is a no-op.
    h = jnp.dot(x_ref[...], w1_ref[...], preferred_element_type=jnp.float32)
    h = jnp.maximum(h + b1_ref[...], 0.0)

    # Hidden layer 2: Linear + bias + ReLU.
    h = jnp.dot(h.astype(cdtype), w2_ref[...], preferred_element_type=jnp.float32)
    h = jnp.maximum(h + b2_ref[...], 0.0)

    # Final Linear (identity-initialized Output head already folded into w3/b3 at
    # prep time). Computed as w3 @ h^T so the per-tile result is a lane-dense
    # (out8, tb) slab with batch along lanes -> no 128x-inflated padded writeback
    # when out_features is tiny.
    y = lax.dot_general(
        w3_ref[...], h.astype(cdtype),
        dimension_numbers=(((1,), (1,)), ((), ())),
        preferred_element_type=jnp.float32)
    o_ref[...] = (y + b3_ref[...]).astype(o_ref.dtype)


# --------------------------------------------------------------------------- #
# One-time parameter prep (hoisted out of the per-forward path)
# --------------------------------------------------------------------------- #
def prepare_params(params, compute_dtype=jnp.bfloat16):
    """Fold the Output head into the last Linear, transpose weights to [in, out],
    pad the output dim to 8 sublanes, and cast MXU inputs to bf16.

    Call once per weight update; reuse the result for every forward.
    The fold y = (h @ w3.T + b3) @ w_out.T = h @ (w_out @ w3).T + b3 @ w_out.T is
    exact for the identity-initialized head (tiny reorder drift if w_out is trained).
    """
    out_features = params["w_out"].shape[0]
    out8 = _round_up(out_features, SUBLANE)

    w3_f = params["w_out"] @ params["w3"]      # [out, h_last]
    b3_f = params["b3"] @ params["w_out"].T    # [1, out]
    h_last = w3_f.shape[1]

    return {
        "w1": params["w1"].T.astype(compute_dtype),   # [in, h1]
        "b1": params["b1"].astype(jnp.float32),        # [1, h1]
        "w2": params["w2"].T.astype(compute_dtype),   # [h1, h2]
        "b2": params["b2"].astype(jnp.float32),        # [1, h2]
        # Kept as [out8, h_last] (NOT transposed) so the kernel can do w3 @ h^T.
        "w3": jnp.zeros((out8, h_last), compute_dtype)
                 .at[:out_features].set(w3_f.astype(compute_dtype)),
        "b3": jnp.zeros((out8, 1), jnp.float32)
                 .at[:out_features, 0].set(b3_f[0]),
        "out_features": out_features,
        "compute_dtype": compute_dtype,
    }


# --------------------------------------------------------------------------- #
# Forward wrapper
# --------------------------------------------------------------------------- #
def _choose_batch_tiling(B, max_batch_tile=2048):
    """Balanced, 128-aligned batch tiles (lane-dense output slab requires tb % 128 == 0).
    Guarantees >= 2 grid steps whenever B > 128 so both v7x TensorCores get work;
    padding is capped at < 128 rows per tile."""
    max_tb = max(LANE, _round_up(max_batch_tile, LANE))
    min_steps = 2 if B > LANE else 1
    n_steps = max(min_steps, pl.cdiv(B, max_tb))
    tb = _round_up(pl.cdiv(B, n_steps), LANE)
    n_steps = pl.cdiv(B, tb)            # re-derive after rounding tb up
    return tb, tb * n_steps, n_steps


def _resident_spec(shape, single_buffer):
    # Constant index_map -> block stays VMEM-resident across all grid steps.
    if single_buffer:
        return pl.BlockSpec(shape, lambda i: (0, 0), pipeline_mode=pl.Buffered(1))
    return pl.BlockSpec(shape, lambda i: (0, 0))


def mlp_forward(x, prep, *, max_batch_tile=2048):
    """x: [B, input_dim] float. prep: output of prepare_params()."""
    B, in_dim = x.shape
    out_features = prep["out_features"]
    cdtype = prep["compute_dtype"]
    w1, b1, w2, b2, w3, b3 = (prep["w1"], prep["b1"], prep["w2"], prep["b2"],
                              prep["w3"], prep["b3"])
    out8 = w3.shape[0]

    tb, Bp, n_steps = _choose_batch_tiling(B, max_batch_tile)

    # In production the activations would ideally arrive in bf16 already.
    xc = x.astype(cdtype)
    if Bp != B:
        xc = jnp.zeros((Bp, in_dim), cdtype).at[:B].set(xc)

    def run(single_buffer_weights):
        in_specs = [pl.BlockSpec((tb, in_dim), lambda i: (i, 0))] + [
            _resident_spec(a.shape, single_buffer_weights)
            for a in (w1, b1, w2, b2, w3, b3)
        ]
        return pl.pallas_call(
            mlp_kernel,
            out_shape=jax.ShapeDtypeStruct((out8, Bp), jnp.float32),
            grid=(n_steps,),
            in_specs=in_specs,
            out_specs=pl.BlockSpec((out8, tb), lambda i: (0, i)),
            compiler_params=pltpu.CompilerParams(
                dimension_semantics=("parallel",)),
        )(xc, w1, b1, w2, b2, w3, b3)

    try:
        # Single-buffer the never-changing resident weights (VMEM hygiene).
        y_pad = run(single_buffer_weights=True)
    except Exception:
        # Fallback for JAX versions without BlockSpec pipeline_mode support.
        y_pad = run(single_buffer_weights=False)

    # Back to PyTorch layout [B, out_features]; padded rows/sublanes are dropped.
    return y_pad[:out_features, :B].T


# --------------------------------------------------------------------------- #
# Init + pure-JAX reference
# --------------------------------------------------------------------------- #
def init_params(key, input_dim, hidden_size, output_features):
    """Deterministic PyTorch-Linear-like init, weights stored [out, in]."""
    dims = [input_dim] + hidden_size + [output_features]
    params = {}
    for i, name in enumerate(["1", "2", "3"]):
        fan_in, fan_out = dims[i], dims[i + 1]
        key, kw, kb = jax.random.split(key, 3)
        bound = 1.0 / jnp.sqrt(fan_in)
        params[f"w{name}"] = jax.random.uniform(
            kw, (fan_out, fan_in), jnp.float32, -bound, bound)
        params[f"b{name}"] = jax.random.uniform(
            kb, (1, fan_out), jnp.float32, -bound, bound)
    # Output head: identity-initialized [out, out], no bias (init=1, bias=False).
    params["w_out"] = jnp.eye(output_features, dtype=jnp.float32)
    return params


def mlp_reference(x, params, compute_dtype=jnp.float32):
    """Pure-JAX reference mirroring the PyTorch forward. compute_dtype=bf16 emulates
    the kernel's bf16 MXU inputs (with f32 accumulation either way)."""
    def c(a):
        return a.astype(compute_dtype).astype(jnp.float32)
    h = jnp.maximum(c(x) @ c(params["w1"]).T + params["b1"], 0.0)
    h = jnp.maximum(c(h) @ c(params["w2"]).T + params["b2"], 0.0)
    phi = c(h) @ c(params["w3"]).T + params["b3"]
    return phi @ params["w_out"].T


if __name__ == "__main__":
    key = jax.random.PRNGKey(0)

    batch = 8
    input_dim = 32
    hidden_size = [32, 16]   # two hidden layers
    output_features = 1

    key, kx, kx2 = jax.random.split(key, 3)
    x = jax.random.normal(kx, (batch, input_dim), dtype=jnp.float32)
    params = init_params(key, input_dim, hidden_size, output_features)

    prep = prepare_params(params)            # one-time weight prep (hoisted)

    # --- Small-batch check (single grid step) ---
    y = jax.block_until_ready(mlp_forward(x, prep))
    assert y.shape == (batch, output_features)
    y_bf16 = mlp_reference(x, params, compute_dtype=jnp.bfloat16)  # matched precision
    y_f32 = mlp_reference(x, params)                                # full f32
    assert jnp.allclose(y, y_bf16, atol=1e-3, rtol=1e-3), float(jnp.max(jnp.abs(y - y_bf16)))
    assert jnp.allclose(y, y_f32, atol=5e-2, rtol=5e-2), float(jnp.max(jnp.abs(y - y_f32)))

    # --- Larger batch exercises multi-tile grid (2 parallel steps) + padding path ---
    batch2 = 384
    x2 = jax.random.normal(kx2, (batch2, input_dim), dtype=jnp.float32)
    y2 = jax.block_until_ready(mlp_forward(x2, prep))
    assert y2.shape == (batch2, output_features)
    y2_bf16 = mlp_reference(x2, params, compute_dtype=jnp.bfloat16)
    assert jnp.allclose(y2, y2_bf16, atol=1e-3, rtol=1e-3), float(jnp.max(jnp.abs(y2 - y2_bf16)))

    print("KERNEL_OK")
</pallas_src>

<mosaic_0001>
module attributes {stable_mosaic.version = 11 : i64} {
  func.func @mlp_kernel(%arg0: i32, %arg1: memref<128x32xbf16, #tpu.memory_space<vmem>>, %arg2: memref<32x32xbf16, #tpu.memory_space<vmem>>, %arg3: memref<1x32xf32, #tpu.memory_space<vmem>>, %arg4: memref<32x16xbf16, #tpu.memory_space<vmem>>, %arg5: memref<1x16xf32, #tpu.memory_space<vmem>>, %arg6: memref<8x16xbf16, #tpu.memory_space<vmem>>, %arg7: memref<8x1xf32, #tpu.memory_space<vmem>>, %arg8: memref<8x128xf32, #tpu.memory_space<vmem>>) attributes {dimension_semantics = [#tpu.dimension_semantics<parallel>], iteration_bounds = array<i64: 1>, scalar_prefetch = 0 : i64, scratch_operands = 0 : i64, tpu.core_type = #tpu.core_type<tc>, window_params = [{transform_indices = @transform_0, window_bounds = array<i64: 128, 32>}, {pipeline_mode = #tpu.pipeline_mode<synchronous>, transform_indices = @transform_1, window_bounds = array<i64: 32, 32>}, {pipeline_mode = #tpu.pipeline_mode<synchronous>, transform_indices = @transform_2, window_bounds = array<i64: 1, 32>}, {pipeline_mode = #tpu.pipeline_mode<synchronous>, transform_indices = @transform_3, window_bounds = array<i64: 32, 16>}, {pipeline_mode = #tpu.pipeline_mode<synchronous>, transform_indices = @transform_4, window_bounds = array<i64: 1, 16>}, {pipeline_mode = #tpu.pipeline_mode<synchronous>, transform_indices = @transform_5, window_bounds = array<i64: 8, 16>}, {pipeline_mode = #tpu.pipeline_mode<synchronous>, transform_indices = @transform_6, window_bounds = array<i64: 8, 1>}, {transform_indices = @transform_7, window_bounds = array<i64: 8, 128>}]} {
    %c0 = arith.constant 0 : index
    %c0_0 = arith.constant 0 : index
    %0 = vector.load %arg1[%c0, %c0_0] : memref<128x32xbf16, #tpu.memory_space<vmem>>, vector<128x32xbf16>
    %c0_1 = arith.constant 0 : index
    %c0_2 = arith.constant 0 : index
    %1 = vector.load %arg2[%c0_1, %c0_2] : memref<32x32xbf16, #tpu.memory_space<vmem>>, vector<32x32xbf16>
    %cst = arith.constant dense<0.000000e+00> : vector<128x32xf32>
    %2 = tpu.matmul %0, %1, %cst {dimension_numbers = #tpu.dot_dimension_numbers<[1], [0], [0], [1], [0, 0, 1, 1], [], []>} : vector<128x32xbf16>, vector<32x32xbf16>, vector<128x32xf32> -> vector<128x32xf32>
    %c0_3 = arith.constant 0 : index
    %c0_4 = arith.constant 0 : index
    %3 = vector.load %arg3[%c0_3, %c0_4] : memref<1x32xf32, #tpu.memory_space<vmem>>, vector<1x32xf32>
    %4 = vector.broadcast %3 : vector<1x32xf32> to vector<128x32xf32>
    %5 = arith.addf %2, %4 : vector<128x32xf32>
    %cst_5 = arith.constant 0.000000e+00 : f32
    %6 = vector.broadcast %cst_5 : f32 to vector<128x32xf32>
    %7 = arith.maximumf %5, %6 : vector<128x32xf32>
    %8 = arith.truncf %7 : vector<128x32xf32> to vector<128x32xbf16>
    %c0_6 = arith.constant 0 : index
    %c0_7 = arith.constant 0 : index
    %9 = vector.load %arg4[%c0_6, %c0_7] : memref<32x16xbf16, #tpu.memory_space<vmem>>, vector<32x16xbf16>
    %cst_8 = arith.constant dense<0.000000e+00> : vector<128x16xf32>
    %10 = tpu.matmul %8, %9, %cst_8 {dimension_numbers = #tpu.dot_dimension_numbers<[1], [0], [0], [1], [0, 0, 1, 1], [], []>} : vector<128x32xbf16>, vector<32x16xbf16>, vector<128x16xf32> -> vector<128x16xf32>
    %c0_9 = arith.constant 0 : index
    %c0_10 = arith.constant 0 : index
    %11 = vector.load %arg5[%c0_9, %c0_10] : memref<1x16xf32, #tpu.memory_space<vmem>>, vector<1x16xf32>
    %12 = vector.broadcast %11 : vector<1x16xf32> to vector<128x16xf32>
    %13 = arith.addf %10, %12 : vector<128x16xf32>
    %cst_11 = arith.constant 0.000000e+00 : f32
    %14 = vector.broadcast %cst_11 : f32 to vector<128x16xf32>
    %15 = arith.maximumf %13, %14 : vector<128x16xf32>
    %c0_12 = arith.constant 0 : index
    %c0_13 = arith.constant 0 : index
    %16 = vector.load %arg6[%c0_12, %c0_13] : memref<8x16xbf16, #tpu.memory_space<vmem>>, vector<8x16xbf16>
    %17 = arith.truncf %15 : vector<128x16xf32> to vector<128x16xbf16>
    %cst_14 = arith.constant dense<0.000000e+00> : vector<8x128xf32>
    %18 = tpu.matmul %16, %17, %cst_14 {dimension_numbers = #tpu.dot_dimension_numbers<[1], [1], [0], [0], [0, 0, 1, 0], [], []>} : vector<8x16xbf16>, vector<128x16xbf16>, vector<8x128xf32> -> vector<8x128xf32>
    %c0_15 = arith.constant 0 : index
    %c0_16 = arith.constant 0 : index
    %19 = vector.load %arg7[%c0_15, %c0_16] : memref<8x1xf32, #tpu.memory_space<vmem>>, vector<8x1xf32>
    %20 = vector.broadcast %19 : vector<8x1xf32> to vector<8x128xf32>
    %21 = arith.addf %18, %20 : vector<8x128xf32>
    %c0_17 = arith.constant 0 : index
    %c0_18 = arith.constant 0 : index
    %22 = vector.load %arg8[%c0_17, %c0_18] : memref<8x128xf32, #tpu.memory_space<vmem>>, vector<8x128xf32>
    tpu.vector_store %arg8[%c0_17, %c0_18], %21 {strides = array<i32>} : memref<8x128xf32, #tpu.memory_space<vmem>>, vector<8x128xf32>,
    return
  }
  func.func @transform_0(%arg0: i32) -> (i32, i32) {
    %c0_i32 = arith.constant 0 : i32
    %c0_i32_0 = arith.constant 0 : i32
    return %arg0, %c0_i32 : i32, i32
  }
  func.func @transform_1(%arg0: i32) -> (i32, i32) {
    %c0_i32 = arith.constant 0 : i32
    %c0_i32_0 = arith.constant 0 : i32
    %c0_i32_1 = arith.constant 0 : i32
    return %c0_i32, %c0_i32_0 : i32, i32
  }
  func.func @transform_2(%arg0: i32) -> (i32, i32) {
    %c0_i32 = arith.constant 0 : i32
    %c0_i32_0 = arith.constant 0 : i32
    %c0_i32_1 = arith.constant 0 : i32
    return %c0_i32, %c0_i32_0 : i32, i32
  }
  func.func @transform_3(%arg0: i32) -> (i32, i32) {
    %c0_i32 = arith.constant 0 : i32
    %c0_i32_0 = arith.constant 0 : i32
    %c0_i32_1 = arith.constant 0 : i32
    return %c0_i32, %c0_i32_0 : i32, i32
  }
  func.func @transform_4(%arg0: i32) -> (i32, i32) {
    %c0_i32 = arith.constant 0 : i32
    %c0_i32_0 = arith.constant 0 : i32
    %c0_i32_1 = arith.constant 0 : i32
    return %c0_i32, %c0_i32_0 : i32, i32
  }
  func.func @transform_5(%arg0: i32) -> (i32, i32) {
    %c0_i32 = arith.constant 0 : i32
    %c0_i32_0 = arith.constant 0 : i32
    %c0_i32_1 = arith.constant 0 : i32
    return %c0_i32, %c0_i32_0 : i32, i32
  }
  func.func @transform_6(%arg0: i32) -> (i32, i32) {
    %c0_i32 = arith.constant 0 : i32
    %c0_i32_0 = arith.constant 0 : i32
    %c0_i32_1 = arith.constant 0 : i32
    return %c0_i32, %c0_i32_0 : i32, i32
  }
  func.func @transform_7(%arg0: i32) -> (i32, i32) {
    %c0_i32 = arith.constant 0 : i32
    %c0_i32_0 = arith.constant 0 : i32
    return %c0_i32, %arg0 : i32, i32
  }
}

module attributes {stable_mosaic.version = 11 : i64} {
  func.func @mlp_kernel(%arg0: i32, %arg1: memref<128x32xbf16, #tpu.memory_space<vmem>>, %arg2: memref<32x32xbf16, #tpu.memory_space<vmem>>, %arg3: memref<1x32xf32, #tpu.memory_space<vmem>>, %arg4: memref<32x16xbf16, #tpu.memory_space<vmem>>, %arg5: memref<1x16xf32, #tpu.memory_space<vmem>>, %arg6: memref<8x16xbf16, #tpu.memory_space<vmem>>, %arg7: memref<8x1xf32, #tpu.memory_space<vmem>>, %arg8: memref<8x128xf32, #tpu.memory_space<vmem>>) attributes {dimension_semantics = [#tpu.dimension_semantics<parallel>], iteration_bounds = array<i64: 1>, scalar_prefetch = 0 : i64, scratch_operands = 0 : i64, tpu.core_type = #tpu.core_type<tc>, window_params = [{transform_indices = @transform_0, window_bounds = array<i64: 128, 32>}, {pipeline_mode = #tpu.pipeline_mode<synchronous>, transform_indices = @transform_1, window_bounds = array<i64: 32, 32>}, {pipeline_mode = #tpu.pipeline_mode<synchronous>, transform_indices = @transform_2, window_bounds = array<i64: 1, 32>}, {pipeline_mode = #tpu.pipeline_mode<synchronous>, transform_indices = @transform_3, window_bounds = array<i64: 32, 16>}, {pipeline_mode = #tpu.pipeline_mode<synchronous>, transform_indices = @transform_4, window_bounds = array<i64: 1, 16>}, {pipeline_mode = #tpu.pipeline_mode<synchronous>, transform_indices = @transform_5, window_bounds = array<i64: 8, 16>}, {pipeline_mode = #tpu.pipeline_mode<synchronous>, transform_indices = @transform_6, window_bounds = array<i64: 8, 1>}, {transform_indices = @transform_7, window_bounds = array<i64: 8, 128>}]} {
    %c0 = arith.constant 0 : index
    %c0_0 = arith.constant 0 : index
    %0 = vector.load %arg1[%c0, %c0_0] : memref<128x32xbf16, #tpu.memory_space<vmem>>, vector<128x32xbf16>
    %c0_1 = arith.constant 0 : index
    %c0_2 = arith.constant 0 : index
    %1 = vector.load %arg2[%c0_1, %c0_2] : memref<32x32xbf16, #tpu.memory_space<vmem>>, vector<32x32xbf16>
    %cst = arith.constant dense<0.000000e+00> : vector<128x32xf32>
    %2 = tpu.matmul %0, %1, %cst {dimension_numbers = #tpu.dot_dimension_numbers<[1], [0], [0], [1], [0, 0, 1, 1], [], []>} : vector<128x32xbf16>, vector<32x32xbf16>, vector<128x32xf32> -> vector<128x32xf32>
    %c0_3 = arith.constant 0 : index
    %c0_4 = arith.constant 0 : index
    %3 = vector.load %arg3[%c0_3, %c0_4] : memref<1x32xf32, #tpu.memory_space<vmem>>, vector<1x32xf32>
    %4 = vector.broadcast %3 : vector<1x32xf32> to vector<128x32xf32>
    %5 = arith.addf %2, %4 : vector<128x32xf32>
    %cst_5 = arith.constant 0.000000e+00 : f32
    %6 = vector.broadcast %cst_5 : f32 to vector<128x32xf32>
    %7 = arith.maximumf %5, %6 : vector<128x32xf32>
    %8 = arith.truncf %7 : vector<128x32xf32> to vector<128x32xbf16>
    %c0_6 = arith.constant 0 : index
    %c0_7 = arith.constant 0 : index
    %9 = vector.load %arg4[%c0_6, %c0_7] : memref<32x16xbf16, #tpu.memory_space<vmem>>, vector<32x16xbf16>
    %cst_8 = arith.constant dense<0.000000e+00> : vector<128x16xf32>
    %10 = tpu.matmul %8, %9, %cst_8 {dimension_numbers = #tpu.dot_dimension_numbers<[1], [0], [0], [1], [0, 0, 1, 1], [], []>} : vector<128x32xbf16>, vector<32x16xbf16>, vector<128x16xf32> -> vector<128x16xf32>
    %c0_9 = arith.constant 0 : index
    %c0_10 = arith.constant 0 : index
    %11 = vector.load %arg5[%c0_9, %c0_10] : memref<1x16xf32, #tpu.memory_space<vmem>>, vector<1x16xf32>
    %12 = vector.broadcast %11 : vector<1x16xf32> to vector<128x16xf32>
    %13 = arith.addf %10, %12 : vector<128x16xf32>
    %cst_11 = arith.constant 0.000000e+00 : f32
    %14 = vector.broadcast %cst_11 : f32 to vector<128x16xf32>
    %15 = arith.maximumf %13, %14 : vector<128x16xf32>
    %c0_12 = arith.constant 0 : index
    %c0_13 = arith.constant 0 : index
    %16 = vector.load %arg6[%c0_12, %c0_13] : memref<8x16xbf16, #tpu.memory_space<vmem>>, vector<8x16xbf16>
    %17 = arith.truncf %15 : vector<128x16xf32> to vector<128x16xbf16>
    %cst_14 = arith.constant dense<0.000000e+00> : vector<8x128xf32>
    %18 = tpu.matmul %16, %17, %cst_14 {dimension_numbers = #tpu.dot_dimension_numbers<[1], [1], [0], [0], [0, 0, 1, 0], [], []>} : vector<8x16xbf16>, vector<128x16xbf16>, vector<8x128xf32> -> vector<8x128xf32>
    %c0_15 = arith.constant 0 : index
    %c0_16 = arith.constant 0 : index
    %19 = vector.load %arg7[%c0_15, %c0_16] : memref<8x1xf32, #tpu.memory_space<vmem>>, vector<8x1xf32>
    %20 = vector.broadcast %19 : vector<8x1xf32> to vector<8x128xf32>
    %21 = arith.addf %18, %20 : vector<8x128xf32>
    %c0_17 = arith.constant 0 : index
    %c0_18 = arith.constant 0 : index
    %22 = vector.load %arg8[%c0_17, %c0_18] : memref<8x128xf32, #tpu.memory_space<vmem>>, vector<8x128xf32>
    tpu.vector_store %arg8[%c0_17, %c0_18], %21 {strides = array<i32>} : memref<8x128xf32, #tpu.memory_space<vmem>>, vector<8x128xf32>,
    return
  }
  func.func @transform_0(%arg0: i32) -> (i32, i32) {
    %c0_i32 = arith.constant 0 : i32
    %c0_i32_0 = arith.constant 0 : i32
    return %arg0, %c0_i32 : i32, i32
  }
  func.func @transform_1(%arg0: i32) -> (i32, i32) {
    %c0_i32 = arith.constant 0 : i32
    %c0_i32_0 = arith.constant 0 : i32
    %c0_i32_1 = arith.constant 0 : i32
    return %c0_i32, %c0_i32_0 : i32, i32
  }
  func.func @transform_2(%arg0: i32) -> (i32, i32) {
    %c0_i32 = arith.constant 0 : i32
    %c0_i32_0 = arith.constant 0 : i32
    %c0_i32_1 = arith.constant 0 : i32
    return %c0_i32, %c0_i32_0 : i32, i32
  }
  func.func @transform_3(%arg0: i32) -> (i32, i32) {
    %c0_i32 = arith.constant 0 : i32
    %c0_i32_0 = arith.constant 0 : i32
    %c0_i32_1 = arith.constant 0 : i32
    return %c0_i32, %c0_i32_0 : i32, i32
  }
  func.func @transform_4(%arg0: i32) -> (i32, i32) {
    %c0_i32 = arith.constant 0 : i32
    %c0_i32_0 = arith.constant 0 : i32
    %c0_i32_1 = arith.constant 0 : i32
    return %c0_i32, %c0_i32_0 : i32, i32
  }
  func.func @transform_5(%arg0: i32) -> (i32, i32) {
    %c0_i32 = arith.constant 0 : i32
    %c0_i32_0 = arith.constant 0 : i32
    %c0_i32_1 = arith.constant 0 : i32
    return %c0_i32, %c0_i32_0 : i32, i32
  }
  func.func @transform_6(%arg0: i32) -> (i32, i32) {
    %c0_i32 = arith.constant 0 : i32
    %c0_i32_0 = arith.constant 0 : i32
    %c0_i32_1 = arith.constant 0 : i32
    return %c0_i32, %c0_i32_0 : i32, i32
  }
  func.func @transform_7(%arg0: i32) -> (i32, i32) {
    %c0_i32 = arith.constant 0 : i32
    %c0_i32_0 = arith.constant 0 : i32
    return %c0_i32, %arg0 : i32, i32
  }
}

</mosaic_0001>

<llo_original>
// kernel: tpu_custom_call.1
$region0: #{tpu_custom_call.1}
  #allocation0 [shape = 'u32[]', space=smem, size = 0x4, offset = 0x4, fixed_abs, tag = 'smem constant byte address 0x4 - core index']
  #allocation1 [shape = 'u32[72,128]{1,0:T(1,128)}', space=vmem, size = 0x9000, scoped, tag = 'internal scratch']
  %s0 = inlined_call_operand.vmem [shape: bf16[128,32], index: 0, kind: input, shape index: {}]
  %s1 = inlined_call_operand.vmem [shape: bf16[32,32], index: 1, kind: input, shape index: {}]
  %s2 = inlined_call_operand.vmem [shape: f32[1,32], index: 2, kind: input, shape index: {}]
  %s3 = inlined_call_operand.vmem [shape: bf16[32,16], index: 3, kind: input, shape index: {}]
  %s4 = inlined_call_operand.vmem [shape: f32[1,16], index: 4, kind: input, shape index: {}]
  %s5 = inlined_call_operand.vmem [shape: bf16[8,16], index: 5, kind: input, shape index: {}]
  %s6 = inlined_call_operand.vmem [shape: f32[8,1], index: 6, kind: input, shape index: {}]
  %s7 = inlined_call_operand.hbm [shape: f32[8,128], index: 7, kind: output, shape index: {}]
  %s8 = sld [smem:[#allocation0]]
  $region38: #{tpu_custom_call.1} parent=0
    _
  %s10 = ssub.s32 1, %s8
  %s11 = scalar_select 0, %s10, %s8
  $region1: #{tpu_custom_call.1} parent=0
    #allocation2 [shape = 'u8[4096]{0}', space=vmem, size = 0x1000, scoped, tag = 'output window, operand 0, single buffered']
    #allocation3 [shape = 's32[1]{0}', space=sflag, size = 0x4, scoped, tag = 'scoped memory for tpu_custom_call.1']
    %12 = vsyncpa [#allocation3], 0
    // Predicated region
    $region2: #{tpu_custom_call.1} parent=1 // pred_check
      _
    $region3: #{tpu_custom_call.1} parent=1 // pred_check_branch
      %14 = sbr.rel (0) target = $region5
    $region4: #{tpu_custom_call.1} parent=1 // pred_region
      _
    $region5: #{tpu_custom_call.1} parent=1 // pred_fallthru
      _
    // Predicated region
    $region6: #{tpu_custom_call.1} parent=1 // pred_check
      _
    $region7: #{tpu_custom_call.1} parent=1 // pred_check_branch
      %16 = sbr.rel (0) target = $region9
    $region8: #{tpu_custom_call.1} parent=1 // pred_region
      _
    $region9: #{tpu_custom_call.1} parent=1 // pred_fallthru
      _
    // Predicated region
    $region10: #{tpu_custom_call.1} parent=1 // pred_check
      _
    $region11: #{tpu_custom_call.1} parent=1 // pred_check_branch
      %18 = sbr.rel (0) target = $region13
    $region12: #{tpu_custom_call.1} parent=1 // pred_region
      _
    $region13: #{tpu_custom_call.1} parent=1 // pred_fallthru
      _
    // Predicated region
    $region14: #{tpu_custom_call.1} parent=1 // pred_check
      _
    $region15: #{tpu_custom_call.1} parent=1 // pred_check_branch
      %20 = sbr.rel (0) target = $region17
    $region16: #{tpu_custom_call.1} parent=1 // pred_region
      _
    $region17: #{tpu_custom_call.1} parent=1 // pred_fallthru
      _
    // Predicated region
    $region18: #{tpu_custom_call.1} parent=1 // pred_check
      _
    $region19: #{tpu_custom_call.1} parent=1 // pred_check_branch
      %22 = sbr.rel (0) target = $region21
    $region20: #{tpu_custom_call.1} parent=1 // pred_region
      _
    $region21: #{tpu_custom_call.1} parent=1 // pred_fallthru
      _
    // Predicated region
    $region22: #{tpu_custom_call.1} parent=1 // pred_check
      _
    $region23: #{tpu_custom_call.1} parent=1 // pred_check_branch
      %24 = sbr.rel (0) target = $region25
    $region24: #{tpu_custom_call.1} parent=1 // pred_region
      _
    $region25: #{tpu_custom_call.1} parent=1 // pred_fallthru
      _
    // Predicated region
    $region26: #{tpu_custom_call.1} parent=1 // pred_check
      _
    $region27: #{tpu_custom_call.1} parent=1 // pred_check_branch
      %26 = sbr.rel (0) target = $region29
    $region28: #{tpu_custom_call.1} parent=1 // pred_region
      _
    $region29: #{tpu_custom_call.1} parent=1 // pred_fallthru
      _
    %v28 = vld [vmem:[%s0] sm:$0xf]
    %v29 = vld [vmem:[%s0 + $0x4] sm:$0xf]
    %v30 = vld [vmem:[%s0 + $0x8] sm:$0xf]
    %v31 = vld [vmem:[%s0 + $0xc] sm:$0xf]
    %v32 = vld [vmem:[%s0 + $0x10] sm:$0xf]
    %v33 = vld [vmem:[%s0 + $0x14] sm:$0xf]
    %v34 = vld [vmem:[%s0 + $0x18] sm:$0xf]
    %v35 = vld [vmem:[%s0 + $0x1c] sm:$0xf]
    %v36 = vld [vmem:[%s0 + $0x20] sm:$0xf]
    %v37 = vld [vmem:[%s0 + $0x24] sm:$0xf]
    %v38 = vld [vmem:[%s0 + $0x28] sm:$0xf]
    %v39 = vld [vmem:[%s0 + $0x2c] sm:$0xf]
    %v40 = vld [vmem:[%s0 + $0x30] sm:$0xf]
    %v41 = vld [vmem:[%s0 + $0x34] sm:$0xf]
    %v42 = vld [vmem:[%s0 + $0x38] sm:$0xf]
    %v43 = vld [vmem:[%s0 + $0x3c] sm:$0xf]
    %v44 = vld [vmem:[%s1] sm:$0xf]
    %v45 = vld [vmem:[%s1 + $0x4] sm:$0xf]
    %v46 = vld [vmem:[%s1 + $0x8] sm:$0xf]
    %v47 = vld [vmem:[%s1 + $0xc] sm:$0xf]
    %v48 = vld [vmem:[%s2] sm:$0x1]
    %v50 = vperm.slane %v48, 0
    %v68 = vunpack.c.l.b16 %v28
    %v69 = vunpack.c.l.b16 %v29
    %v70 = vunpack.c.l.b16 %v30
    %v71 = vunpack.c.l.b16 %v31
    %v72 = vunpack.c.l.b16 %v32
    %v73 = vunpack.c.l.b16 %v33
    %v74 = vunpack.c.l.b16 %v34
    %v75 = vunpack.c.l.b16 %v35
    %v76 = vunpack.c.l.b16 %v36
    %v77 = vunpack.c.l.b16 %v37
    %v78 = vunpack.c.l.b16 %v38
    %v79 = vunpack.c.l.b16 %v39
    %v80 = vunpack.c.l.b16 %v40
    %v81 = vunpack.c.l.b16 %v41
    %v82 = vunpack.c.l.b16 %v42
    %v83 = vunpack.c.l.b16 %v43
    %v84 = vpack.c.b16 %v69, %v68
    %v85 = vpack.c.b16 %v71, %v70
    %v86 = vpack.c.b16 %v73, %v72
    %v87 = vpack.c.b16 %v75, %v74
    %v88 = vpack.c.b16 %v77, %v76
    %v89 = vpack.c.b16 %v79, %v78
    %v90 = vpack.c.b16 %v81, %v80
    %v91 = vpack.c.b16 %v83, %v82
    %v96 = vunpack.c.l.b16 %v44
    %v97 = vunpack.c.l.b16 %v45
    %v98 = vunpack.c.l.b16 %v46
    %v99 = vunpack.c.l.b16 %v47
    %v100 = vpack.c.b16 %v97, %v96
    %v101 = vpack.c.b16 %v99, %v98
    %vm104 = vcmask 261120
    %v106 = vsel %vm104, %v84, 0
    %v109 = vsel %vm104, %v85, 0
    %v112 = vsel %vm104, %v86, 0
    %v115 = vsel %vm104, %v87, 0
    %v118 = vsel %vm104, %v88, 0
    %v121 = vsel %vm104, %v89, 0
    %v124 = vsel %vm104, %v90, 0
    %v127 = vsel %vm104, %v91, 0
    %129 = vmatpush.bf16.msra.mxu0 0
    %130 = vmatpush.bf16.msra.mxu0 0
    %131 = vmatpush.bf16.msra.mxu0 0
    %132 = vmatpush.bf16.msra.mxu0 0
    %133 = vmatpush.bf16.msra.mxu0 0
    %134 = vmatpush.bf16.msra.mxu0 0
    %135 = vmatpush.bf16.msra.mxu0 %v101
    %136 = vmatpush.bf16.msra.mxu0 %v100
    %137 = vmatmul.bf16.gmra.mxu0 %v106
    %v138 = vpop.f32.mrf.mxu0
    %v139 = vadd.f32 %v50, %v138
    %v140 = vpop.f32.mrf.mxu0
    %v141 = vadd.f32 %v50, %v140
    %142 = vmatmul.bf16.gmra.mxu0 %v109
    %v143 = vpop.f32.mrf.mxu0
    %v144 = vadd.f32 %v50, %v143
    %v145 = vpop.f32.mrf.mxu0
    %v146 = vadd.f32 %v50, %v145
    %147 = vmatmul.bf16.gmra.mxu0 %v112
    %v148 = vpop.f32.mrf.mxu0
    %v149 = vadd.f32 %v50, %v148
    %v150 = vpop.f32.mrf.mxu0
    %v151 = vadd.f32 %v50, %v150
    %152 = vmatmul.bf16.gmra.mxu0 %v115
    %v153 = vpop.f32.mrf.mxu0
    %v154 = vadd.f32 %v50, %v153
    %v155 = vpop.f32.mrf.mxu0
    %v156 = vadd.f32 %v50, %v155
    %157 = vmatmul.bf16.gmra.mxu0 %v118
    %v158 = vpop.f32.mrf.mxu0
    %v159 = vadd.f32 %v50, %v158
    %v160 = vpop.f32.mrf.mxu0
    %v161 = vadd.f32 %v50, %v160
    %162 = vmatmul.bf16.gmra.mxu0 %v121
    %v163 = vpop.f32.mrf.mxu0
    %v164 = vadd.f32 %v50, %v163
    %v165 = vpop.f32.mrf.mxu0
    %v166 = vadd.f32 %v50, %v165
    %167 = vmatmul.bf16.gmra.mxu0 %v124
    %v168 = vpop.f32.mrf.mxu0
    %v169 = vadd.f32 %v50, %v168
    %v170 = vpop.f32.mrf.mxu0
    %v171 = vadd.f32 %v50, %v170
    %172 = vmatmul.bf16.gmra.mxu0 %v127
    %v173 = vpop.f32.mrf.mxu0
    %v174 = vadd.f32 %v50, %v173
    %v175 = vpop.f32.mrf.mxu0
    %v176 = vadd.f32 %v50, %v175
    %177 = vdwg.mxu0
    %v178 = vmax.f32 %v139, 0.0
    %v179 = vmax.f32 %v141, 0.0
    %v180 = vmax.f32 %v144, 0.0
    %v181 = vmax.f32 %v146, 0.0
    %v182 = vmax.f32 %v149, 0.0
    %v183 = vmax.f32 %v151, 0.0
    %v184 = vmax.f32 %v154, 0.0
    %v185 = vmax.f32 %v156, 0.0
    %v186 = vmax.f32 %v159, 0.0
    %v187 = vmax.f32 %v161, 0.0
    %v188 = vmax.f32 %v164, 0.0
    %v189 = vmax.f32 %v166, 0.0
    %v190 = vmax.f32 %v169, 0.0
    %v191 = vmax.f32 %v171, 0.0
    %v192 = vmax.f32 %v174, 0.0
    %v193 = vmax.f32 %v176, 0.0
    %v194 = vpack.c.bf16 %v179, %v178
    %v195 = vpack.c.bf16 %v181, %v180
    %v196 = vpack.c.bf16 %v183, %v182
    %v197 = vpack.c.bf16 %v185, %v184
    %v198 = vpack.c.bf16 %v187, %v186
    %v199 = vpack.c.bf16 %v189, %v188
    %v200 = vpack.c.bf16 %v191, %v190
    %v201 = vpack.c.bf16 %v193, %v192
    %v202 = vld [vmem:[%s3] sm:$0xf]
    %v203 = vld [vmem:[%s3 + $0x4] sm:$0xf]
    %v204 = vld [vmem:[%s3 + $0x8] sm:$0xf]
    %v205 = vld [vmem:[%s3 + $0xc] sm:$0xf]
    %v206 = vld [vmem:[%s4] sm:$0x1]
    %v208 = vperm.slane %v206, 0
    %v214 = vunpack.c.l.b16 %v202
    %v215 = vunpack.c.l.b16 %v203
    %v216 = vunpack.c.l.b16 %v204
    %v217 = vunpack.c.l.b16 %v205
    %v218 = vpack.c.b16 %v215, %v214
    %v219 = vpack.c.b16 %v217, %v216
    %v223 = vsel %vm104, %v194, 0
    %v226 = vsel %vm104, %v195, 0
    %v229 = vsel %vm104, %v196, 0
    %v232 = vsel %vm104, %v197, 0
    %v235 = vsel %vm104, %v198, 0
    %v238 = vsel %vm104, %v199, 0
    %v241 = vsel %vm104, %v200, 0
    %v244 = vsel %vm104, %v201, 0
    %246 = vmatpush.bf16.msra.mxu0 0
    %247 = vmatpush.bf16.msra.mxu0 0
    %248 = vmatpush.bf16.msra.mxu0 0
    %249 = vmatpush.bf16.msra.mxu0 0
    %250 = vmatpush.bf16.msra.mxu0 0
    %251 = vmatpush.bf16.msra.mxu0 0
    %252 = vmatpush.bf16.msra.mxu0 %v219
    %253 = vmatpush.bf16.msra.mxu0 %v218
    %254 = vmatmul.bf16.gmra.mxu0 %v223
    %v255 = vpop.f32.mrf.mxu0
    %v256 = vadd.f32 %v208, %v255
    %v257 = vpop.f32.mrf.mxu0
    %v258 = vadd.f32 %v208, %v257
    %259 = vmatmul.bf16.gmra.mxu0 %v226
    %v260 = vpop.f32.mrf.mxu0
    %v261 = vadd.f32 %v208, %v260
    %v262 = vpop.f32.mrf.mxu0
    %v263 = vadd.f32 %v208, %v262
    %264 = vmatmul.bf16.gmra.mxu0 %v229
    %v265 = vpop.f32.mrf.mxu0
    %v266 = vadd.f32 %v208, %v265
    %v267 = vpop.f32.mrf.mxu0
    %v268 = vadd.f32 %v208, %v267
    %269 = vmatmul.bf16.gmra.mxu0 %v232
    %v270 = vpop.f32.mrf.mxu0
    %v271 = vadd.f32 %v208, %v270
    %v272 = vpop.f32.mrf.mxu0
    %v273 = vadd.f32 %v208, %v272
    %274 = vmatmul.bf16.gmra.mxu0 %v235
    %v275 = vpop.f32.mrf.mxu0
    %v276 = vadd.f32 %v208, %v275
    %v277 = vpop.f32.mrf.mxu0
    %v278 = vadd.f32 %v208, %v277
    %279 = vmatmul.bf16.gmra.mxu0 %v238
    %v280 = vpop.f32.mrf.mxu0
    %v281 = vadd.f32 %v208, %v280
    %v282 = vpop.f32.mrf.mxu0
    %v283 = vadd.f32 %v208, %v282
    %284 = vmatmul.bf16.gmra.mxu0 %v241
    %v285 = vpop.f32.mrf.mxu0
    %v286 = vadd.f32 %v208, %v285
    %v287 = vpop.f32.mrf.mxu0
    %v288 = vadd.f32 %v208, %v287
    %289 = vmatmul.bf16.gmra.mxu0 %v244
    %v290 = vpop.f32.mrf.mxu0
    %v291 = vadd.f32 %v208, %v290
    %v292 = vpop.f32.mrf.mxu0
    %v293 = vadd.f32 %v208, %v292
    %294 = vdwg.mxu0
    %v295 = vmax.f32 %v256, 0.0
    %v296 = vmax.f32 %v258, 0.0
    %v297 = vmax.f32 %v261, 0.0
    %v298 = vmax.f32 %v263, 0.0
    %v299 = vmax.f32 %v266, 0.0
    %v300 = vmax.f32 %v268, 0.0
    %v301 = vmax.f32 %v271, 0.0
    %v302 = vmax.f32 %v273, 0.0
    %v303 = vmax.f32 %v276, 0.0
    %v304 = vmax.f32 %v278, 0.0
    %v305 = vmax.f32 %v281, 0.0
    %v306 = vmax.f32 %v283, 0.0
    %v307 = vmax.f32 %v286, 0.0
    %v308 = vmax.f32 %v288, 0.0
    %v309 = vmax.f32 %v291, 0.0
    %v310 = vmax.f32 %v293, 0.0
    %v311 = vld [vmem:[%s5] sm:$0xf]
    %v312 = vpack.c.bf16 %v296, %v295
    %v313 = vpack.c.bf16 %v298, %v297
    %v314 = vpack.c.bf16 %v300, %v299
    %v315 = vpack.c.bf16 %v302, %v301
    %v316 = vpack.c.bf16 %v304, %v303
    %v317 = vpack.c.bf16 %v306, %v305
    %v318 = vpack.c.bf16 %v308, %v307
    %v319 = vpack.c.bf16 %v310, %v309
    %v320 = vld [vmem:[%s6] sm:$0xff]
    %322 = vset.pattern.permute.xlu0 0
    %323 = vperm.xlu0 %322, %v320
    %v324 = vpop.permute.xlu0 %323
    %vm326 = vcmask 130048
    %v328 = vsel %vm326, %v311, 0
    %v331 = vsel %vm326, %v312, 0
    %v334 = vsel %vm326, %v313, 0
    %v337 = vsel %vm326, %v314, 0
    %v340 = vsel %vm326, %v315, 0
    %v343 = vsel %vm326, %v316, 0
    %v346 = vsel %vm326, %v317, 0
    %v349 = vsel %vm326, %v318, 0
    %v352 = vsel %vm326, %v319, 0
    %354 = vmatpush.bf16.xpose.msra.mxu0 %v352
    %355 = vmatpush.bf16.xpose.msra.mxu0 %v349
    %356 = vmatpush.bf16.xpose.msra.mxu0 %v346
    %357 = vmatpush.bf16.xpose.msra.mxu0 %v343
    %358 = vmatpush.bf16.xpose.msra.mxu0 %v340
    %359 = vmatpush.bf16.xpose.msra.mxu0 %v337
    %360 = vmatpush.bf16.xpose.msra.mxu0 %v334
    %361 = vmatpush.bf16.xpose.msra.mxu0 %v331
    %362 = vmatmul.bf16.gmra.mxu0 %v328
    %v363 = vpop.f32.mrf.mxu0
    %v364 = vadd.f32 %v324, %v363
    %v365 = vpop.f32.mrf.mxu0
    %366 = vdwg.mxu0
    %367 = vst [vmem:[#allocation2] sm:$0xff] %v364
    // Predicated region
    $region30: #{tpu_custom_call.1} parent=1 // pred_check
      _
    $region31: #{tpu_custom_call.1} parent=1 // pred_check_branch
      %369 = sbr.rel (0) target = $region33
    $region32: #{tpu_custom_call.1} parent=1 // pred_region
      %371 = vsyncadd [#allocation3], 0
      %s373 = sshll.u32 [#allocation2], 4
      %s374 = int_to_ptr.vmem [resolvable:$true] %s373
      %s375 = sshll.u32 %s7, 4
      %s376 = int_to_ptr.hbm [resolvable:$true] %s375
      %378 = dma.vmem_to_hbm [thread:$0]  %s374, 128, %s376, [#allocation3]
    $region33: #{tpu_custom_call.1} parent=1 // pred_fallthru
      _
    // Predicated region
    $region34: #{tpu_custom_call.1} parent=1 // pred_check
      _
    $region35: #{tpu_custom_call.1} parent=1 // pred_check_branch
      %380 = sbr.rel (0) target = $region37
    $region36: #{tpu_custom_call.1} parent=1 // pred_region
      %382 = dma.done [#allocation3], 128
    $region37: #{tpu_custom_call.1} parent=1 // pred_fallthru
      _
    %383 = vsyncpa [#allocation3], 1

// kernel: tpu_custom_call.1
$region0: #{tpu_custom_call.1}
  #allocation0 [shape = 'u32[]', space=smem, size = 0x4, offset = 0x4, fixed_abs, tag = 'smem constant byte address 0x4 - core index']
  #allocation1 [shape = 'u32[72,128]{1,0:T(1,128)}', space=vmem, size = 0x9000, scoped, tag = 'internal scratch']
  %s0 = inlined_call_operand.vmem [shape: bf16[128,32], index: 0, kind: input, shape index: {}]
  %s1 = inlined_call_operand.vmem [shape: bf16[32,32], index: 1, kind: input, shape index: {}]
  %s2 = inlined_call_operand.vmem [shape: f32[1,32], index: 2, kind: input, shape index: {}]
  %s3 = inlined_call_operand.vmem [shape: bf16[32,16], index: 3, kind: input, shape index: {}]
  %s4 = inlined_call_operand.vmem [shape: f32[1,16], index: 4, kind: input, shape index: {}]
  %s5 = inlined_call_operand.vmem [shape: bf16[8,16], index: 5, kind: input, shape index: {}]
  %s6 = inlined_call_operand.vmem [shape: f32[8,1], index: 6, kind: input, shape index: {}]
  %s7 = inlined_call_operand.hbm [shape: f32[8,128], index: 7, kind: output, shape index: {}]
  %s8 = sld [smem:[#allocation0]]
  $region38: #{tpu_custom_call.1} parent=0
    _
  %s10 = ssub.s32 1, %s8
  %s11 = scalar_select 0, %s10, %s8
  $region1: #{tpu_custom_call.1} parent=0
    #allocation2 [shape = 'u8[4096]{0}', space=vmem, size = 0x1000, scoped, tag = 'output window, operand 0, single buffered']
    #allocation3 [shape = 's32[1]{0}', space=sflag, size = 0x4, scoped, tag = 'scoped memory for tpu_custom_call.1']
    %12 = vsyncpa [#allocation3], 0
    // Predicated region
    $region2: #{tpu_custom_call.1} parent=1 // pred_check
      _
    $region3: #{tpu_custom_call.1} parent=1 // pred_check_branch
      %14 = sbr.rel (0) target = $region5
    $region4: #{tpu_custom_call.1} parent=1 // pred_region
      _
    $region5: #{tpu_custom_call.1} parent=1 // pred_fallthru
      _
    // Predicated region
    $region6: #{tpu_custom_call.1} parent=1 // pred_check
      _
    $region7: #{tpu_custom_call.1} parent=1 // pred_check_branch
      %16 = sbr.rel (0) target = $region9
    $region8: #{tpu_custom_call.1} parent=1 // pred_region
      _
    $region9: #{tpu_custom_call.1} parent=1 // pred_fallthru
      _
    // Predicated region
    $region10: #{tpu_custom_call.1} parent=1 // pred_check
      _
    $region11: #{tpu_custom_call.1} parent=1 // pred_check_branch
      %18 = sbr.rel (0) target = $region13
    $region12: #{tpu_custom_call.1} parent=1 // pred_region
      _
    $region13: #{tpu_custom_call.1} parent=1 // pred_fallthru
      _
    // Predicated region
    $region14: #{tpu_custom_call.1} parent=1 // pred_check
      _
    $region15: #{tpu_custom_call.1} parent=1 // pred_check_branch
      %20 = sbr.rel (0) target = $region17
    $region16: #{tpu_custom_call.1} parent=1 // pred_region
      _
    $region17: #{tpu_custom_call.1} parent=1 // pred_fallthru
      _
    // Predicated region
    $region18: #{tpu_custom_call.1} parent=1 // pred_check
      _
    $region19: #{tpu_custom_call.1} parent=1 // pred_check_branch
      %22 = sbr.rel (0) target = $region21
    $region20: #{tpu_custom_call.1} parent=1 // pred_region
      _
    $region21: #{tpu_custom_call.1} parent=1 // pred_fallthru
      _
    // Predicated region
    $region22: #{tpu_custom_call.1} parent=1 // pred_check
      _
    $region23: #{tpu_custom_call.1} parent=1 // pred_check_branch
      %24 = sbr.rel (0) target = $region25
    $region24: #{tpu_custom_call.1} parent=1 // pred_region
      _
    $region25: #{tpu_custom_call.1} parent=1 // pred_fallthru
      _
    // Predicated region
    $region26: #{tpu_custom_call.1} parent=1 // pred_check
      _
    $region27: #{tpu_custom_call.1} parent=1 // pred_check_branch
      %26 = sbr.rel (0) target = $region29
    $region28: #{tpu_custom_call.1} parent=1 // pred_region
      _
    $region29: #{tpu_custom_call.1} parent=1 // pred_fallthru
      _
    %v28 = vld [vmem:[%s0] sm:$0xf]
    %v29 = vld [vmem:[%s0 + $0x4] sm:$0xf]
    %v30 = vld [vmem:[%s0 + $0x8] sm:$0xf]
    %v31 = vld [vmem:[%s0 + $0xc] sm:$0xf]
    %v32 = vld [vmem:[%s0 + $0x10] sm:$0xf]
    %v33 = vld [vmem:[%s0 + $0x14] sm:$0xf]
    %v34 = vld [vmem:[%s0 + $0x18] sm:$0xf]
    %v35 = vld [vmem:[%s0 + $0x1c] sm:$0xf]
    %v36 = vld [vmem:[%s0 + $0x20] sm:$0xf]
    %v37 = vld [vmem:[%s0 + $0x24] sm:$0xf]
    %v38 = vld [vmem:[%s0 + $0x28] sm:$0xf]
    %v39 = vld [vmem:[%s0 + $0x2c] sm:$0xf]
    %v40 = vld [vmem:[%s0 + $0x30] sm:$0xf]
    %v41 = vld [vmem:[%s0 + $0x34] sm:$0xf]
    %v42 = vld [vmem:[%s0 + $0x38] sm:$0xf]
    %v43 = vld [vmem:[%s0 + $0x3c] sm:$0xf]
    %v44 = vld [vmem:[%s1] sm:$0xf]
    %v45 = vld [vmem:[%s1 + $0x4] sm:$0xf]
    %v46 = vld [vmem:[%s1 + $0x8] sm:$0xf]
    %v47 = vld [vmem:[%s1 + $0xc] sm:$0xf]
    %v48 = vld [vmem:[%s2] sm:$0x1]
    %v50 = vperm.slane %v48, 0
    %v68 = vunpack.c.l.b16 %v28
    %v69 = vunpack.c.l.b16 %v29
    %v70 = vunpack.c.l.b16 %v30
    %v71 = vunpack.c.l.b16 %v31
    %v72 = vunpack.c.l.b16 %v32
    %v73 = vunpack.c.l.b16 %v33
    %v74 = vunpack.c.l.b16 %v34
    %v75 = vunpack.c.l.b16 %v35
    %v76 = vunpack.c.l.b16 %v36
    %v77 = vunpack.c.l.b16 %v37
    %v78 = vunpack.c.l.b16 %v38
    %v79 = vunpack.c.l.b16 %v39
    %v80 = vunpack.c.l.b16 %v40
    %v81 = vunpack.c.l.b16 %v41
    %v82 = vunpack.c.l.b16 %v42
    %v83 = vunpack.c.l.b16 %v43
    %v84 = vpack.c.b16 %v69, %v68
    %v85 = vpack.c.b16 %v71, %v70
    %v86 = vpack.c.b16 %v73, %v72
    %v87 = vpack.c.b16 %v75, %v74
    %v88 = vpack.c.b16 %v77, %v76
    %v89 = vpack.c.b16 %v79, %v78
    %v90 = vpack.c.b16 %v81, %v80
    %v91 = vpack.c.b16 %v83, %v82
    %v96 = vunpack.c.l.b16 %v44
    %v97 = vunpack.c.l.b16 %v45
    %v98 = vunpack.c.l.b16 %v46
    %v99 = vunpack.c.l.b16 %v47
    %v100 = vpack.c.b16 %v97, %v96
    %v101 = vpack.c.b16 %v99, %v98
    %vm104 = vcmask 261120
    %v106 = vsel %vm104, %v84, 0
    %v109 = vsel %vm104, %v85, 0
    %v112 = vsel %vm104, %v86, 0
    %v115 = vsel %vm104, %v87, 0
    %v118 = vsel %vm104, %v88, 0
    %v121 = vsel %vm104, %v89, 0
    %v124 = vsel %vm104, %v90, 0
    %v127 = vsel %vm104, %v91, 0
    %129 = vmatpush.bf16.msra.mxu0 0
    %130 = vmatpush.bf16.msra.mxu0 0
    %131 = vmatpush.bf16.msra.mxu0 0
    %132 = vmatpush.bf16.msra.mxu0 0
    %133 = vmatpush.bf16.msra.mxu0 0
    %134 = vmatpush.bf16.msra.mxu0 0
    %135 = vmatpush.bf16.msra.mxu0 %v101
    %136 = vmatpush.bf16.msra.mxu0 %v100
    %137 = vmatmul.bf16.gmra.mxu0 %v106
    %v138 = vpop.f32.mrf.mxu0
    %v139 = vadd.f32 %v50, %v138
    %v140 = vpop.f32.mrf.mxu0
    %v141 = vadd.f32 %v50, %v140
    %142 = vmatmul.bf16.gmra.mxu0 %v109
    %v143 = vpop.f32.mrf.mxu0
    %v144 = vadd.f32 %v50, %v143
    %v145 = vpop.f32.mrf.mxu0
    %v146 = vadd.f32 %v50, %v145
    %147 = vmatmul.bf16.gmra.mxu0 %v112
    %v148 = vpop.f32.mrf.mxu0
    %v149 = vadd.f32 %v50, %v148
    %v150 = vpop.f32.mrf.mxu0
    %v151 = vadd.f32 %v50, %v150
    %152 = vmatmul.bf16.gmra.mxu0 %v115
    %v153 = vpop.f32.mrf.mxu0
    %v154 = vadd.f32 %v50, %v153
    %v155 = vpop.f32.mrf.mxu0
    %v156 = vadd.f32 %v50, %v155
    %157 = vmatmul.bf16.gmra.mxu0 %v118
    %v158 = vpop.f32.mrf.mxu0
    %v159 = vadd.f32 %v50, %v158
    %v160 = vpop.f32.mrf.mxu0
    %v161 = vadd.f32 %v50, %v160
    %162 = vmatmul.bf16.gmra.mxu0 %v121
    %v163 = vpop.f32.mrf.mxu0
    %v164 = vadd.f32 %v50, %v163
    %v165 = vpop.f32.mrf.mxu0
    %v166 = vadd.f32 %v50, %v165
    %167 = vmatmul.bf16.gmra.mxu0 %v124
    %v168 = vpop.f32.mrf.mxu0
    %v169 = vadd.f32 %v50, %v168
    %v170 = vpop.f32.mrf.mxu0
    %v171 = vadd.f32 %v50, %v170
    %172 = vmatmul.bf16.gmra.mxu0 %v127
    %v173 = vpop.f32.mrf.mxu0
    %v174 = vadd.f32 %v50, %v173
    %v175 = vpop.f32.mrf.mxu0
    %v176 = vadd.f32 %v50, %v175
    %177 = vdwg.mxu0
    %v178 = vmax.f32 %v139, 0.0
    %v179 = vmax.f32 %v141, 0.0
    %v180 = vmax.f32 %v144, 0.0
    %v181 = vmax.f32 %v146, 0.0
    %v182 = vmax.f32 %v149, 0.0
    %v183 = vmax.f32 %v151, 0.0
    %v184 = vmax.f32 %v154, 0.0
    %v185 = vmax.f32 %v156, 0.0
    %v186 = vmax.f32 %v159, 0.0
    %v187 = vmax.f32 %v161, 0.0
    %v188 = vmax.f32 %v164, 0.0
    %v189 = vmax.f32 %v166, 0.0
    %v190 = vmax.f32 %v169, 0.0
    %v191 = vmax.f32 %v171, 0.0
    %v192 = vmax.f32 %v174, 0.0
    %v193 = vmax.f32 %v176, 0.0
    %v194 = vpack.c.bf16 %v179, %v178
    %v195 = vpack.c.bf16 %v181, %v180
    %v196 = vpack.c.bf16 %v183, %v182
    %v197 = vpack.c.bf16 %v185, %v184
    %v198 = vpack.c.bf16 %v187, %v186
    %v199 = vpack.c.bf16 %v189, %v188
    %v200 = vpack.c.bf16 %v191, %v190
    %v201 = vpack.c.bf16 %v193, %v192
    %v202 = vld [vmem:[%s3] sm:$0xf]
    %v203 = vld [vmem:[%s3 + $0x4] sm:$0xf]
    %v204 = vld [vmem:[%s3 + $0x8] sm:$0xf]
    %v205 = vld [vmem:[%s3 + $0xc] sm:$0xf]
    %v206 = vld [vmem:[%s4] sm:$0x1]
    %v208 = vperm.slane %v206, 0
    %v214 = vunpack.c.l.b16 %v202
    %v215 = vunpack.c.l.b16 %v203
    %v216 = vunpack.c.l.b16 %v204
    %v217 = vunpack.c.l.b16 %v205
    %v218 = vpack.c.b16 %v215, %v214
    %v219 = vpack.c.b16 %v217, %v216
    %v223 = vsel %vm104, %v194, 0
    %v226 = vsel %vm104, %v195, 0
    %v229 = vsel %vm104, %v196, 0
    %v232 = vsel %vm104, %v197, 0
    %v235 = vsel %vm104, %v198, 0
    %v238 = vsel %vm104, %v199, 0
    %v241 = vsel %vm104, %v200, 0
    %v244 = vsel %vm104, %v201, 0
    %246 = vmatpush.bf16.msra.mxu0 0
    %247 = vmatpush.bf16.msra.mxu0 0
    %248 = vmatpush.bf16.msra.mxu0 0
    %249 = vmatpush.bf16.msra.mxu0 0
    %250 = vmatpush.bf16.msra.mxu0 0
    %251 = vmatpush.bf16.msra.mxu0 0
    %252 = vmatpush.bf16.msra.mxu0 %v219
    %253 = vmatpush.bf16.msra.mxu0 %v218
    %254 = vmatmul.bf16.gmra.mxu0 %v223
    %v255 = vpop.f32.mrf.mxu0
    %v256 = vadd.f32 %v208, %v255
    %v257 = vpop.f32.mrf.mxu0
    %v258 = vadd.f32 %v208, %v257
    %259 = vmatmul.bf16.gmra.mxu0 %v226
    %v260 = vpop.f32.mrf.mxu0
    %v261 = vadd.f32 %v208, %v260
    %v262 = vpop.f32.mrf.mxu0
    %v263 = vadd.f32 %v208, %v262
    %264 = vmatmul.bf16.gmra.mxu0 %v229
    %v265 = vpop.f32.mrf.mxu0
    %v266 = vadd.f32 %v208, %v265
    %v267 = vpop.f32.mrf.mxu0
    %v268 = vadd.f32 %v208, %v267
    %269 = vmatmul.bf16.gmra.mxu0 %v232
    %v270 = vpop.f32.mrf.mxu0
    %v271 = vadd.f32 %v208, %v270
    %v272 = vpop.f32.mrf.mxu0
    %v273 = vadd.f32 %v208, %v272
    %274 = vmatmul.bf16.gmra.mxu0 %v235
    %v275 = vpop.f32.mrf.mxu0
    %v276 = vadd.f32 %v208, %v275
    %v277 = vpop.f32.mrf.mxu0
    %v278 = vadd.f32 %v208, %v277
    %279 = vmatmul.bf16.gmra.mxu0 %v238
    %v280 = vpop.f32.mrf.mxu0
    %v281 = vadd.f32 %v208, %v280
    %v282 = vpop.f32.mrf.mxu0
    %v283 = vadd.f32 %v208, %v282
    %284 = vmatmul.bf16.gmra.mxu0 %v241
    %v285 = vpop.f32.mrf.mxu0
    %v286 = vadd.f32 %v208, %v285
    %v287 = vpop.f32.mrf.mxu0
    %v288 = vadd.f32 %v208, %v287
    %289 = vmatmul.bf16.gmra.mxu0 %v244
    %v290 = vpop.f32.mrf.mxu0
    %v291 = vadd.f32 %v208, %v290
    %v292 = vpop.f32.mrf.mxu0
    %v293 = vadd.f32 %v208, %v292
    %294 = vdwg.mxu0
    %v295 = vmax.f32 %v256, 0.0
    %v296 = vmax.f32 %v258, 0.0
    %v297 = vmax.f32 %v261, 0.0
    %v298 = vmax.f32 %v263, 0.0
    %v299 = vmax.f32 %v266, 0.0
    %v300 = vmax.f32 %v268, 0.0
    %v301 = vmax.f32 %v271, 0.0
    %v302 = vmax.f32 %v273, 0.0
    %v303 = vmax.f32 %v276, 0.0
    %v304 = vmax.f32 %v278, 0.0
    %v305 = vmax.f32 %v281, 0.0
    %v306 = vmax.f32 %v283, 0.0
    %v307 = vmax.f32 %v286, 0.0
    %v308 = vmax.f32 %v288, 0.0
    %v309 = vmax.f32 %v291, 0.0
    %v310 = vmax.f32 %v293, 0.0
    %v311 = vld [vmem:[%s5] sm:$0xf]
    %v312 = vpack.c.bf16 %v296, %v295
    %v313 = vpack.c.bf16 %v298, %v297
    %v314 = vpack.c.bf16 %v300, %v299
    %v315 = vpack.c.bf16 %v302, %v301
    %v316 = vpack.c.bf16 %v304, %v303
    %v317 = vpack.c.bf16 %v306, %v305
    %v318 = vpack.c.bf16 %v308, %v307
    %v319 = vpack.c.bf16 %v310, %v309
    %v320 = vld [vmem:[%s6] sm:$0xff]
    %322 = vset.pattern.permute.xlu0 0
    %323 = vperm.xlu0 %322, %v320
    %v324 = vpop.permute.xlu0 %323
    %vm326 = vcmask 130048
    %v328 = vsel %vm326, %v311, 0
    %v331 = vsel %vm326, %v312, 0
    %v334 = vsel %vm326, %v313, 0
    %v337 = vsel %vm326, %v314, 0
    %v340 = vsel %vm326, %v315, 0
    %v343 = vsel %vm326, %v316, 0
    %v346 = vsel %vm326, %v317, 0
    %v349 = vsel %vm326, %v318, 0
    %v352 = vsel %vm326, %v319, 0
    %354 = vmatpush.bf16.xpose.msra.mxu0 %v352
    %355 = vmatpush.bf16.xpose.msra.mxu0 %v349
    %356 = vmatpush.bf16.xpose.msra.mxu0 %v346
    %357 = vmatpush.bf16.xpose.msra.mxu0 %v343
    %358 = vmatpush.bf16.xpose.msra.mxu0 %v340
    %359 = vmatpush.bf16.xpose.msra.mxu0 %v337
    %360 = vmatpush.bf16.xpose.msra.mxu0 %v334
    %361 = vmatpush.bf16.xpose.msra.mxu0 %v331
    %362 = vmatmul.bf16.gmra.mxu0 %v328
    %v363 = vpop.f32.mrf.mxu0
    %v364 = vadd.f32 %v324, %v363
    %v365 = vpop.f32.mrf.mxu0
    %366 = vdwg.mxu0
    %367 = vst [vmem:[#allocation2] sm:$0xff] %v364
    // Predicated region
    $region30: #{tpu_custom_call.1} parent=1 // pred_check
      _
    $region31: #{tpu_custom_call.1} parent=1 // pred_check_branch
      %369 = sbr.rel (0) target = $region33
    $region32: #{tpu_custom_call.1} parent=1 // pred_region
      %371 = vsyncadd [#allocation3], 0
      %s373 = sshll.u32 [#allocation2], 4
      %s374 = int_to_ptr.vmem [resolvable:$true] %s373
      %s375 = sshll.u32 %s7, 4
      %s376 = int_to_ptr.hbm [resolvable:$true] %s375
      %378 = dma.vmem_to_hbm [thread:$0]  %s374, 128, %s376, [#allocation3]
    $region33: #{tpu_custom_call.1} parent=1 // pred_fallthru
      _
    // Predicated region
    $region34: #{tpu_custom_call.1} parent=1 // pred_check
      _
    $region35: #{tpu_custom_call.1} parent=1 // pred_check_branch
      %380 = sbr.rel (0) target = $region37
    $region36: #{tpu_custom_call.1} parent=1 // pred_region
      %382 = dma.done [#allocation3], 128
    $region37: #{tpu_custom_call.1} parent=1 // pred_fallthru
      _
    %383 = vsyncpa [#allocation3], 1

</llo_original>
